<compile_context>
chip_gen: v6e
topology: v6e:2x2x1
jax: 0.10.0
libtpu: 0.0.40
codegen_flags: <defaults>
</compile_context>

<pallas_src>
import functools

import jax
import jax.numpy as jnp
from jax.experimental import pallas as pl
from jax.experimental.pallas import tpu as pltpu

HWGQ_STEPS = {1: 0.799, 2: 0.538, 3: 0.3217, 4: 0.185, 5: 0.185,
              6: 0.185, 7: 0.185, 8: 0.185}
GAUSS_STEPS = {0: 2.0, 1: 1.596, 2: 0.996, 3: 0.586, 4: 0.335, 5: 0.188,
               6: 0.104, 7: 0.057, 8: 0.031, 15: 1 / 8, 16: 1 / 8}

_LANE = 128
_SUBLANE = 8
_TARGET_BLOCK_BYTES = 2 * 1024 * 1024   # activation-kernel block (~85% roofline)
_K_NO_TILE_MAX = 2048                   # below this keep full, UNPADDED K
_TK = 512                               # K tile when K is large
_TM = 512                               # M tile (output rows)
_TN = 256                               # N tile (Cout), clipped to Cout_pad


def _round_up(v, m):
    return (v + m - 1) // m * m


def _compiler_params(dimension_semantics):
    """CompilerParams with a chip-aware scoped-VMEM limit (review item)."""
    kwargs = dict(dimension_semantics=dimension_semantics)
    try:
        cap = pltpu.get_tpu_info().vmem_capacity_bytes
        kwargs["vmem_limit_bytes"] = int(min(cap * 3 // 4, 100 * 1024 * 1024))
    except Exception:  # API drift / not queryable -> fall back to defaults
        pass
    return pltpu.CompilerParams(**kwargs)


# ----------------------------- mixed HWGQ activation ------------------------

def _mix_activ_kernel(sw_ref, x_ref, o_ref, *, abits):
    """out = sum_i sw[i] * HWGQ_{abits[i]}(x), one fused elementwise pass."""
    x = x_ref[...]
    acc = jnp.zeros_like(x)
    for i, bit in enumerate(abits):
        if bit >= 32:
            y = jnp.maximum(x, 0.0)
        else:
            step = HWGQ_STEPS[bit]
            inv_step = 1.0 / step                       # compile-time constant
            clip_thr = step * float(2 ** bit - 1)
            y = jnp.clip(x, 0.0, clip_thr)
            y = jnp.round(y * inv_step) * step          # half-to-even == torch.round
        acc = acc + sw_ref[i] * y                       # softmax weight from SMEM
    o_ref[...] = acc.astype(o_ref.dtype)


def mix_quant_activ(x, alpha_activ, abits):
    """MixQuantActiv.forward (also the module's `quant_skip` intermediate)."""
    orig_shape = x.shape
    n = x.size
    sw_a = jax.nn.softmax(alpha_activ.astype(jnp.float32))

    # Lane-dense slab; common conv-activation sizes are 128-aligned -> no pad.
    cols = None
    for c in (4096, 2048, 1024, 512, 256, 128):
        if n % c == 0:
            cols = c
            break
    if cols is None:                                    # rare unaligned tail
        cols = _LANE
        rows = pl.cdiv(n, cols)
        pad = rows * cols - n
        x2d = jnp.pad(x.reshape(-1), (0, pad)).reshape(rows, cols)
        padded = True
    else:
        rows = n // cols
        x2d = x.reshape(rows, cols)
        padded = False

    bytes_per_row = cols * x2d.dtype.itemsize
    tile_rows = max(_SUBLANE,
                    (_TARGET_BLOCK_BYTES // bytes_per_row) // _SUBLANE * _SUBLANE)
    tile_rows = min(tile_rows, rows)
    grid = (pl.cdiv(rows, tile_rows),)

    out2d = pl.pallas_call(
        functools.partial(_mix_activ_kernel, abits=tuple(abits)),
        out_shape=jax.ShapeDtypeStruct((rows, cols), x.dtype),
        grid=grid,
        in_specs=[
            pl.BlockSpec(memory_space=pltpu.MemorySpace.SMEM),   # softmax weights
            pl.BlockSpec((tile_rows, cols), lambda i: (i, 0)),
        ],
        out_specs=pl.BlockSpec((tile_rows, cols), lambda i: (i, 0)),
        compiler_params=_compiler_params(("parallel",)),
    )(sw_a, x2d)

    if padded:
        return out2d.reshape(-1)[:n].reshape(orig_shape)
    return out2d.reshape(orig_shape)


# ------------------ mixed Gaussian-quantized weight (one pass) ---------------

def _mix_weight_kernel(steps_ref, inv_steps_ref, sw_ref, w_ref, o_ref, *, wbits):
    """o = sum_i sw[i] * gauss_quant(W_i, steps[i], wbits[i]), bf16 output."""
    wmix = jnp.zeros(o_ref.shape, dtype=jnp.float32)
    for i, bit in enumerate(wbits):
        w = w_ref[i]                                    # (tk, tn) raw f32 weights
        step = steps_ref[i]                             # runtime scalars (SMEM)
        inv_step = inv_steps_ref[i]                     # reciprocal: no VPU divide
        thr = (2.0 ** bit / 2.0 - 0.5) * step
        y = (jnp.round(w * inv_step + 0.5) - 0.5) * step
        y = jnp.clip(y, -thr, thr)
        wmix = wmix + sw_ref[i] * y
    o_ref[...] = wmix.astype(o_ref.dtype)


def _mixed_weight_bf16(weights, alpha_weight, wbits, k_eff, cout_pad):
    """Quantize + mix the per-branch weights ONCE -> (K_eff, Cout_pad) bf16."""
    nb, cout, cin, kh, kw = weights.shape
    k = cin * kh * kw
    sw_w = jax.nn.softmax(alpha_weight.astype(jnp.float32))
    # torch `weight.std()` is the unbiased (n-1) estimator -> ddof=1.
    stds = jnp.stack([jnp.std(weights[i], ddof=1) for i in range(nb)])
    gsteps = jnp.asarray([GAUSS_STEPS[b] for b in wbits], dtype=jnp.float32)
    steps = (gsteps * stds).astype(jnp.float32)
    inv_steps = 1.0 / steps

    wstack = weights.astype(jnp.float32).reshape(nb, cout, k).transpose(0, 2, 1)
    # Zero-padded K rows / Cout cols quantize to +-0.5*step, but padded K rows
    # only ever multiply the (zero) padded A columns and padded Cout columns
    # are sliced off -> numerics unchanged.
    wstack = jnp.pad(wstack, ((0, 0), (0, k_eff - k), (0, cout_pad - cout)))

    tk_w = k_eff if k_eff <= _K_NO_TILE_MAX else _TK
    tn_w = min(_TN, cout_pad)
    grid = (pl.cdiv(k_eff, tk_w), pl.cdiv(cout_pad, tn_w))

    return pl.pallas_call(
        functools.partial(_mix_weight_kernel, wbits=tuple(wbits)),
        out_shape=jax.ShapeDtypeStruct((k_eff, cout_pad), jnp.bfloat16),
        grid=grid,
        in_specs=[
            pl.BlockSpec(memory_space=pltpu.MemorySpace.SMEM),   # steps
            pl.BlockSpec(memory_space=pltpu.MemorySpace.SMEM),   # 1/steps
            pl.BlockSpec(memory_space=pltpu.MemorySpace.SMEM),   # softmax weights
            pl.BlockSpec((nb, tk_w, tn_w), lambda kb, nb_: (0, kb, nb_)),
        ],
        out_specs=pl.BlockSpec((tk_w, tn_w), lambda kb, nb_: (kb, nb_)),
        compiler_params=_compiler_params(("parallel", "parallel")),
    )(steps, inv_steps, sw_w, wstack)


# ------------- fused (HWGQ-mix + matmul) tiled convolution kernel ------------

def _fused_conv_kernel(sw_a_ref, a_ref, w_ref, o_ref, acc_ref, *, abits):
    """acc += HWGQ_mix(A_tile) @ Wmix_tile  (bf16 MXU operands, f32 accum)."""
    @pl.when(pl.program_id(2) == 0)
    def _():
        acc_ref[...] = jnp.zeros_like(acc_ref)

    x = a_ref[...]                                      # raw im2col patches, f32
    aq = jnp.zeros_like(x)
    for i, bit in enumerate(abits):
        if bit >= 32:
            y = jnp.maximum(x, 0.0)
        else:
            step = HWGQ_STEPS[bit]
            inv_step = 1.0 / step
            clip_thr = step * float(2 ** bit - 1)
            y = jnp.clip(x, 0.0, clip_thr)
            y = jnp.round(y * inv_step) * step
        aq = aq + sw_a_ref[i] * y

    acc_ref[...] += jnp.dot(aq.astype(jnp.bfloat16), w_ref[...],
                            preferred_element_type=jnp.float32)

    @pl.when(pl.program_id(2) == pl.num_programs(2) - 1)
    def _():
        o_ref[...] = acc_ref[...].astype(o_ref.dtype)


def _im2col(x, ksize, stride, padding, dilation):
    """NCHW -> (N*Ho*Wo, Cin*KH*KW) patches, matching OIHW weight flattening."""
    n, c, h, w = x.shape
    kh, kw = ksize
    xp = jnp.pad(x, ((0, 0), (0, 0), (padding, padding), (padding, padding)))
    h_out = (h + 2 * padding - dilation * (kh - 1) - 1) // stride + 1
    w_out = (w + 2 * padding - dilation * (kw - 1) - 1) // stride + 1
    cols = []
    for i in range(kh):
        for j in range(kw):
            hs, ws = i * dilation, j * dilation
            cols.append(xp[:, :, hs:hs + (h_out - 1) * stride + 1:stride,
                           ws:ws + (w_out - 1) * stride + 1:stride])
    pat = jnp.stack(cols, axis=0)                       # (KH*KW, N, C, Ho, Wo)
    pat = pat.transpose(1, 3, 4, 2, 0)                  # (N, Ho, Wo, C, KH*KW)
    return pat.reshape(n * h_out * w_out, c * kh * kw), h_out, w_out


def mix_activ_conv2d(x, alpha_activ, abits, alpha_weight, wbits, weights,
                     *, stride=1, padding=0, dilation=1, groups=1):
    """Forward pass of MixActivConv2d (share_weight=False, bias=False)."""
    assert groups == 1  # TODO(synk): grouped convolution not implemented
    nb, cout, cin, kh, kw = weights.shape
    assert nb == len(wbits) and cin == x.shape[1]

    sw_a = jax.nn.softmax(alpha_activ.astype(jnp.float32))

    # im2col of the RAW activation (the HWGQ mix is fused into the matmul
    # kernel, so the quantized activation never round-trips HBM).
    patches, h_out, w_out = _im2col(x.astype(jnp.float32), (kh, kw),
                                    stride, padding, dilation)
    m, k = patches.shape
    cout_pad = _round_up(cout, _LANE)

    if k <= _K_NO_TILE_MAX:
        k_eff, tk = k, k            # full, UNPADDED K block: no extra (M,K) copy
    else:
        tk = _TK
        k_eff = _round_up(k, tk)    # pad K so every reduction block is full
        patches = jnp.pad(patches, ((0, 0), (0, k_eff - k)))

    # Quantize + softmax-mix the weights ONCE (bf16 for the MXU).
    wmix = _mixed_weight_bf16(weights, alpha_weight, wbits, k_eff, cout_pad)

    tm = m if m <= _TM else _TM
    tn = min(_TN, cout_pad)
    grid = (pl.cdiv(m, tm), pl.cdiv(cout_pad, tn), pl.cdiv(k_eff, tk))

    out2d = pl.pallas_call(
        functools.partial(_fused_conv_kernel, abits=tuple(abits)),
        out_shape=jax.ShapeDtypeStruct((m, cout_pad), x.dtype),
        grid=grid,
        in_specs=[
            pl.BlockSpec(memory_space=pltpu.MemorySpace.SMEM),    # sw_a
            pl.BlockSpec((tm, tk), lambda i, j, kk: (i, kk)),     # raw patches
            pl.BlockSpec((tk, tn), lambda i, j, kk: (kk, j)),     # mixed weight
        ],
        out_specs=pl.BlockSpec((tm, tn), lambda i, j, kk: (i, j)),
        scratch_shapes=[pltpu.VMEM((tm, tn), jnp.float32)],
        compiler_params=_compiler_params(("parallel", "parallel", "arbitrary")),
    )(sw_a, patches, wmix)

    n_batch = x.shape[0]
    out = out2d[:, :cout].reshape(n_batch, h_out, w_out, cout)
    return out.transpose(0, 3, 1, 2)                                # NCHW

    # TODO(synk): size_product / memory_size buffers and complexity_loss /
    # fetch_best_arch are host-side NAS bookkeeping, not part of the numeric
    # forward pass, and are not reproduced here.


# --------------------------------- reference --------------------------------

def _hwgq_ref(x, bit):
    if bit >= 32:
        return jnp.maximum(x, 0.0)
    step = HWGQ_STEPS[bit]
    y = jnp.clip(x, 0.0, step * float(2 ** bit - 1))
    return jnp.round(y / step) * step


def _gauss_quant_ref(w, step, bit):
    lvls = 2.0 ** bit / 2.0
    y = (jnp.round(w / step + 0.5) - 0.5) * step
    thr = (lvls - 0.5) * step
    return jnp.clip(y, -thr, thr)


def _mixed_weight_ref(weights, alpha_weight, wbits):
    sw_w = jax.nn.softmax(alpha_weight.astype(jnp.float32))
    wmix = jnp.zeros_like(weights[0])
    for i, b in enumerate(wbits):
        step = GAUSS_STEPS[b] * jnp.std(weights[i], ddof=1)
        wmix = wmix + sw_w[i] * _gauss_quant_ref(weights[i], step, b)
    return wmix


if __name__ == "__main__":
    key = jax.random.PRNGKey(0)
    kx, kw_ = jax.random.split(key, 2)

    # MixActivConv2d(inplane=4, outplane=8, abits=[1,2], wbits=[1,2],
    #                kernel_size=3, stride=1, padding=1, bias=False)
    abits = (1, 2)
    wbits = (1, 2)
    inplane, outplane, ksize = 4, 8, 3
    stride, padding = 1, 1

    x = jax.random.normal(kx, (2, inplane, 16, 16), dtype=jnp.float32) * 1.5
    weights = jax.random.normal(
        kw_, (len(wbits), outplane, inplane, ksize, ksize), dtype=jnp.float32) * 0.1
    alpha_activ = jnp.asarray([0.3, -0.2], dtype=jnp.float32)
    alpha_weight = jnp.asarray([-0.1, 0.4], dtype=jnp.float32)

    out = mix_activ_conv2d(x, alpha_activ, abits, alpha_weight, wbits, weights,
                           stride=stride, padding=padding)
    out = jax.block_until_ready(out)
    assert out.shape == (2, outplane, 16, 16) and out.dtype == x.dtype

    # References --------------------------------------------------------------
    sw_a_ref = jax.nn.softmax(alpha_activ.astype(jnp.float32))
    xq_ref = sum(sw_a_ref[i] * _hwgq_ref(x, b) for i, b in enumerate(abits))
    wmix_ref = _mixed_weight_ref(weights, alpha_weight, wbits)

    def conv_ref(a, w):
        return jax.lax.conv_general_dilated(
            a, w, window_strides=(stride, stride),
            padding=[(padding, padding), (padding, padding)],
            dimension_numbers=("NCHW", "OIHW", "NCHW"),
            precision=jax.lax.Precision.HIGHEST)

    # (1) Tight check vs a reference that applies the same DELIBERATE bf16
    #     rounding of the MXU operands (f32 accumulation on both sides).
    ref_bf16 = conv_ref(xq_ref.astype(jnp.bfloat16).astype(jnp.float32),
                        wmix_ref.astype(jnp.bfloat16).astype(jnp.float32))
    assert jnp.allclose(out, ref_bf16, atol=1e-2, rtol=1e-2), \
        float(jnp.max(jnp.abs(out - ref_bf16)))

    # (2) Loose check vs the pure-f32 PyTorch-equivalent reference; the only
    #     difference is the intentional bf16 MXU-operand rounding (review item:
    #     loosen the tolerance deliberately, not silently).
    ref_f32 = conv_ref(xq_ref, wmix_ref)
    assert jnp.allclose(out, ref_f32, atol=5e-2, rtol=5e-2), \
        float(jnp.max(jnp.abs(out - ref_f32)))

    # Standalone mixed-HWGQ kernel (quant_skip), incl. the >=32-bit ReLU branch.
    xq_pal = jax.block_until_ready(mix_quant_activ(x, alpha_activ, abits))
    assert jnp.allclose(xq_pal, xq_ref, atol=1e-4, rtol=1e-4)
    xq32 = jax.block_until_ready(
        mix_quant_activ(x, jnp.zeros((1,), jnp.float32), (32,)))
    assert jnp.allclose(xq32, jnp.maximum(x, 0.0), atol=1e-6)

    print("KERNEL_OK")
</pallas_src>

<mosaic_0001>
module attributes {stable_mosaic.version = 11 : i64} {
  func.func @_mix_weight_kernel(%arg0: i32, %arg1: i32, %arg2: memref<2xf32, #tpu.memory_space<smem>>, %arg3: memref<2xf32, #tpu.memory_space<smem>>, %arg4: memref<2xf32, #tpu.memory_space<smem>>, %arg5: memref<2x36x128xf32, #tpu.memory_space<vmem>>, %arg6: memref<36x128xbf16, #tpu.memory_space<vmem>>) attributes {dimension_semantics = [#tpu.dimension_semantics<parallel>, #tpu.dimension_semantics<parallel>], iteration_bounds = array<i64: 1, 1>, scalar_prefetch = 0 : i64, scratch_operands = 0 : i64, tpu.core_type = #tpu.core_type<tc>, window_params = [{transform_indices = @transform_0, window_bounds = array<i64: 2>}, {transform_indices = @transform_1, window_bounds = array<i64: 2>}, {transform_indices = @transform_2, window_bounds = array<i64: 2>}, {transform_indices = @transform_3, window_bounds = array<i64: 2, 36, 128>}, {transform_indices = @transform_4, window_bounds = array<i64: 36, 128>}]} {
    %cst = arith.constant 0.000000e+00 : f32
    %0 = vector.broadcast %cst : f32 to vector<36x128xf32>
    %c0 = arith.constant 0 : index
    %c0_0 = arith.constant 0 : index
    %c0_1 = arith.constant 0 : index
    %1 = vector.load %arg5[%c0, %c0_0, %c0_1] : memref<2x36x128xf32, #tpu.memory_space<vmem>>, vector<1x36x128xf32>
    %2 = vector.shape_cast %1 : vector<1x36x128xf32> to vector<36x128xf32>
    %c0_2 = arith.constant 0 : index
    %3 = memref.load %arg2[%c0_2] : memref<2xf32, #tpu.memory_space<smem>>
    %c0_3 = arith.constant 0 : index
    %4 = memref.load %arg3[%c0_3] : memref<2xf32, #tpu.memory_space<smem>>
    %cst_4 = arith.constant 5.000000e-01 : f32
    %5 = arith.mulf %cst_4, %3 : f32
    %6 = vector.broadcast %4 : f32 to vector<36x128xf32>
    %7 = arith.mulf %2, %6 : vector<36x128xf32>
    %cst_5 = arith.constant 5.000000e-01 : f32
    %8 = vector.broadcast %cst_5 : f32 to vector<36x128xf32>
    %9 = arith.addf %7, %8 : vector<36x128xf32>
    %10 = math.roundeven %9 : vector<36x128xf32>
    %cst_6 = arith.constant 5.000000e-01 : f32
    %11 = vector.broadcast %cst_6 : f32 to vector<36x128xf32>
    %12 = arith.subf %10, %11 : vector<36x128xf32>
    %13 = vector.broadcast %3 : f32 to vector<36x128xf32>
    %14 = arith.mulf %12, %13 : vector<36x128xf32>
    %cst_7 = arith.constant 0.000000e+00 : f32
    %15 = arith.subf %cst_7, %5 : f32
    %16 = vector.broadcast %15 : f32 to vector<36x128xf32>
    %17 = arith.maximumf %16, %14 : vector<36x128xf32>
    %18 = vector.broadcast %5 : f32 to vector<36x128xf32>
    %19 = arith.minimumf %18, %17 : vector<36x128xf32>
    %c0_8 = arith.constant 0 : index
    %20 = memref.load %arg4[%c0_8] : memref<2xf32, #tpu.memory_space<smem>>
    %21 = vector.broadcast %20 : f32 to vector<36x128xf32>
    %22 = arith.mulf %21, %19 : vector<36x128xf32>
    %23 = arith.addf %0, %22 : vector<36x128xf32>
    %c1 = arith.constant 1 : index
    %c0_9 = arith.constant 0 : index
    %c0_10 = arith.constant 0 : index
    %24 = vector.load %arg5[%c1, %c0_9, %c0_10] : memref<2x36x128xf32, #tpu.memory_space<vmem>>, vector<1x36x128xf32>
    %25 = vector.shape_cast %24 : vector<1x36x128xf32> to vector<36x128xf32>
    %c1_11 = arith.constant 1 : index
    %26 = memref.load %arg2[%c1_11] : memref<2xf32, #tpu.memory_space<smem>>
    %c1_12 = arith.constant 1 : index
    %27 = memref.load %arg3[%c1_12] : memref<2xf32, #tpu.memory_space<smem>>
    %cst_13 = arith.constant 1.500000e+00 : f32
    %28 = arith.mulf %cst_13, %26 : f32
    %29 = vector.broadcast %27 : f32 to vector<36x128xf32>
    %30 = arith.mulf %25, %29 : vector<36x128xf32>
    %cst_14 = arith.constant 5.000000e-01 : f32
    %31 = vector.broadcast %cst_14 : f32 to vector<36x128xf32>
    %32 = arith.addf %30, %31 : vector<36x128xf32>
    %33 = math.roundeven %32 : vector<36x128xf32>
    %cst_15 = arith.constant 5.000000e-01 : f32
    %34 = vector.broadcast %cst_15 : f32 to vector<36x128xf32>
    %35 = arith.subf %33, %34 : vector<36x128xf32>
    %36 = vector.broadcast %26 : f32 to vector<36x128xf32>
    %37 = arith.mulf %35, %36 : vector<36x128xf32>
    %cst_16 = arith.constant 0.000000e+00 : f32
    %38 = arith.subf %cst_16, %28 : f32
    %39 = vector.broadcast %38 : f32 to vector<36x128xf32>
    %40 = arith.maximumf %39, %37 : vector<36x128xf32>
    %41 = vector.broadcast %28 : f32 to vector<36x128xf32>
    %42 = arith.minimumf %41, %40 : vector<36x128xf32>
    %c1_17 = arith.constant 1 : index
    %43 = memref.load %arg4[%c1_17] : memref<2xf32, #tpu.memory_space<smem>>
    %44 = vector.broadcast %43 : f32 to vector<36x128xf32>
    %45 = arith.mulf %44, %42 : vector<36x128xf32>
    %46 = arith.addf %23, %45 : vector<36x128xf32>
    %47 = arith.truncf %46 : vector<36x128xf32> to vector<36x128xbf16>
    %c0_18 = arith.constant 0 : index
    %c0_19 = arith.constant 0 : index
    %48 = vector.load %arg6[%c0_18, %c0_19] : memref<36x128xbf16, #tpu.memory_space<vmem>>, vector<36x128xbf16>
    tpu.vector_store %arg6[%c0_18, %c0_19], %47 {strides = array<i32>} : memref<36x128xbf16, #tpu.memory_space<vmem>>, vector<36x128xbf16>,
    return
  }
  func.func @transform_0(%arg0: i32, %arg1: i32) -> i32 {
    %c0_i32 = arith.constant 0 : i32
    %c0_i32_0 = arith.constant 0 : i32
    return %c0_i32 : i32
  }
  func.func @transform_1(%arg0: i32, %arg1: i32) -> i32 {
    %c0_i32 = arith.constant 0 : i32
    %c0_i32_0 = arith.constant 0 : i32
    return %c0_i32 : i32
  }
  func.func @transform_2(%arg0: i32, %arg1: i32) -> i32 {
    %c0_i32 = arith.constant 0 : i32
    %c0_i32_0 = arith.constant 0 : i32
    return %c0_i32 : i32
  }
  func.func @transform_3(%arg0: i32, %arg1: i32) -> (i32, i32, i32) {
    %c0_i32 = arith.constant 0 : i32
    %c0_i32_0 = arith.constant 0 : i32
    return %c0_i32, %arg0, %arg1 : i32, i32, i32
  }
  func.func @transform_4(%arg0: i32, %arg1: i32) -> (i32, i32) {
    %c0_i32 = arith.constant 0 : i32
    return %arg0, %arg1 : i32, i32
  }
}

</mosaic_0001>

<llo_original>
// kernel: tpu_custom_call.1
$region0: #{tpu_custom_call.1}
  #allocation0 [shape = 'u32[]', space=smem, size = 0x4, offset = 0x4, fixed_abs, tag = 'smem constant byte address 0x4 - core index']
  #allocation1 [shape = 'u32[144,128]{1,0:T(1,128)}', space=vmem, size = 0x12000, scoped, tag = 'internal scratch']
  %s0 = inlined_call_operand.vmem [shape: f32[2], index: 0, kind: input, shape index: {}]
  %s1 = inlined_call_operand.vmem [shape: f32[2], index: 1, kind: input, shape index: {}]
  %s2 = inlined_call_operand.vmem [shape: f32[2], index: 2, kind: input, shape index: {}]
  %s3 = inlined_call_operand.vmem [shape: f32[2,36,128], index: 3, kind: input, shape index: {}]
  %s4 = inlined_call_operand.hbm [shape: bf16[36,128], index: 4, kind: output, shape index: {}]
  %s5 = sld [smem:[#allocation0]]
  $region38: #{tpu_custom_call.1} parent=0
    _
  %s7 = ssub.s32 1, %s5
  %s8 = scalar_select 0, %s7, %s5
  $region1: #{tpu_custom_call.1} parent=0
    #allocation2 [shape = 'u8[512]{0}', space=smem, size = 0x200, scoped, tag = 'input window, operand 0, single buffered']
    #allocation3 [shape = 's32[1]{0}', space=sflag, size = 0x4, scoped, tag = 'scoped memory for tpu_custom_call.1']
    #allocation4 [shape = 's32[1]{0}', space=sflag, size = 0x4, scoped, tag = 'scoped memory for tpu_custom_call.1']
    #allocation5 [shape = 'u8[512]{0}', space=smem, size = 0x200, scoped, tag = 'input window, operand 1, single buffered']
    #allocation6 [shape = 's32[1]{0}', space=sflag, size = 0x4, scoped, tag = 'scoped memory for tpu_custom_call.1']
    #allocation7 [shape = 'u8[512]{0}', space=smem, size = 0x200, scoped, tag = 'input window, operand 2, single buffered']
    #allocation8 [shape = 'u8[10240]{0}', space=vmem, size = 0x2800, scoped, tag = 'output window, operand 0, single buffered']
    %9 = vsyncpa [#allocation4], 0
    %10 = vsyncpa [#allocation6], 0
    %11 = vsyncpa [#allocation3], 0
    // Predicated region
    $region2: #{tpu_custom_call.1} parent=1 // pred_check
      _
    $region3: #{tpu_custom_call.1} parent=1 // pred_check_branch
      %13 = sbr.rel (0) target = $region5
    $region4: #{tpu_custom_call.1} parent=1 // pred_region
      %s15 = ssub.s32 16, 16
      %16 = vsyncadd [#allocation4], %s15
      %s18 = sshll.u32 %s0, 4
      %s19 = int_to_ptr.vmem [resolvable:$true] %s18
      %21 = dma.vmem_to_smem %s19, 16, [#allocation2], [#allocation4]
    $region5: #{tpu_custom_call.1} parent=1 // pred_fallthru
      _
    // Predicated region
    $region6: #{tpu_custom_call.1} parent=1 // pred_check
      _
    $region7: #{tpu_custom_call.1} parent=1 // pred_check_branch
      %23 = sbr.rel (0) target = $region9
    $region8: #{tpu_custom_call.1} parent=1 // pred_region
      %s25 = ssub.s32 16, 16
      %26 = vsyncadd [#allocation6], %s25
      %s28 = sshll.u32 %s1, 4
      %s29 = int_to_ptr.vmem [resolvable:$true] %s28
      %31 = dma.vmem_to_smem %s29, 16, [#allocation5], [#allocation6]
    $region9: #{tpu_custom_call.1} parent=1 // pred_fallthru
      _
    // Predicated region
    $region10: #{tpu_custom_call.1} parent=1 // pred_check
      _
    $region11: #{tpu_custom_call.1} parent=1 // pred_check_branch
      %33 = sbr.rel (0) target = $region13
    $region12: #{tpu_custom_call.1} parent=1 // pred_region
      %s35 = ssub.s32 16, 16
      %36 = vsyncadd [#allocation6], %s35
      %s38 = sshll.u32 %s2, 4
      %s39 = int_to_ptr.vmem [resolvable:$true] %s38
      %41 = dma.vmem_to_smem %s39, 16, [#allocation7], [#allocation6]
    $region13: #{tpu_custom_call.1} parent=1 // pred_fallthru
      _
    // Predicated region
    $region14: #{tpu_custom_call.1} parent=1 // pred_check
      _
    $region15: #{tpu_custom_call.1} parent=1 // pred_check_branch
      %43 = sbr.rel (0) target = $region17
    $region16: #{tpu_custom_call.1} parent=1 // pred_region
      _
    $region17: #{tpu_custom_call.1} parent=1 // pred_fallthru
      _
    // Predicated region
    $region18: #{tpu_custom_call.1} parent=1 // pred_check
      _
    $region19: #{tpu_custom_call.1} parent=1 // pred_check_branch
      %45 = sbr.rel (0) target = $region21
    $region20: #{tpu_custom_call.1} parent=1 // pred_region
      %46 = dma.done [#allocation4], 16
    $region21: #{tpu_custom_call.1} parent=1 // pred_fallthru
      _
    // Predicated region
    $region22: #{tpu_custom_call.1} parent=1 // pred_check
      _
    $region23: #{tpu_custom_call.1} parent=1 // pred_check_branch
      %48 = sbr.rel (0) target = $region25
    $region24: #{tpu_custom_call.1} parent=1 // pred_region
      %49 = dma.done [#allocation6], 16
    $region25: #{tpu_custom_call.1} parent=1 // pred_fallthru
      _
    // Predicated region
    $region26: #{tpu_custom_call.1} parent=1 // pred_check
      _
    $region27: #{tpu_custom_call.1} parent=1 // pred_check_branch
      %51 = sbr.rel (0) target = $region29
    $region28: #{tpu_custom_call.1} parent=1 // pred_region
      %52 = dma.done [#allocation6], 16
    $region29: #{tpu_custom_call.1} parent=1 // pred_fallthru
      _
    %53 = sfence
    %v54 = vld [vmem:[%s3] sm:$0xff]
    %v55 = vld [vmem:[%s3 + $0x8] sm:$0xff]
    %v56 = vld [vmem:[%s3 + $0x10] sm:$0xff]
    %v57 = vld [vmem:[%s3 + $0x18] sm:$0xff]
    %v58 = vld [vmem:[%s3 + $0x20] sm:$0xf]
    %s59 = sld [smem:[#allocation2]]
    %s60 = sld [smem:[#allocation5]]
    %s61 = smul.f32 %s59, 0.5
    %v62 = vstv %s60
    %v63 = vmul.f32 %v54, %v62
    %v64 = vmul.f32 %v55, %v62
    %v65 = vmul.f32 %v56, %v62
    %v66 = vmul.f32 %v57, %v62
    %v67 = vmul.f32 %v58, %v62
    %v68 = vadd.f32 %v63, 0.5
    %v69 = vadd.f32 %v64, 0.5
    %v70 = vadd.f32 %v65, 0.5
    %v71 = vadd.f32 %v66, 0.5
    %v72 = vadd.f32 %v67, 0.5
    %v73 = vround.ne.pseudo %v68
    %v74 = vround.ne.pseudo %v69
    %v75 = vround.ne.pseudo %v70
    %v76 = vround.ne.pseudo %v71
    %v77 = vround.ne.pseudo %v72
    %v78 = vsub.f32 %v73, 0.5
    %v79 = vsub.f32 %v74, 0.5
    %v80 = vsub.f32 %v75, 0.5
    %v81 = vsub.f32 %v76, 0.5
    %v82 = vsub.f32 %v77, 0.5
    %v83 = vstv %s59
    %v84 = vmul.f32 %v78, %v83
    %v85 = vmul.f32 %v79, %v83
    %v86 = vmul.f32 %v80, %v83
    %v87 = vmul.f32 %v81, %v83
    %v88 = vmul.f32 %v82, %v83
    %s89 = ssub.f32 0.0, %s61
    %v90 = vstv %s89
    %v91 = vmax.f32 %v90, %v84
    %v92 = vmax.f32 %v90, %v85
    %v93 = vmax.f32 %v90, %v86
    %v94 = vmax.f32 %v90, %v87
    %v95 = vmax.f32 %v90, %v88
    %v96 = vstv %s61
    %v97 = vmin.f32 %v96, %v91
    %v98 = vmin.f32 %v96, %v92
    %v99 = vmin.f32 %v96, %v93
    %v100 = vmin.f32 %v96, %v94
    %v101 = vmin.f32 %v96, %v95
    %s102 = sld [smem:[#allocation7]]
    %v103 = vstv %s102
    %v104 = vmul.f32 %v103, %v97
    %v105 = vmul.f32 %v103, %v98
    %v106 = vmul.f32 %v103, %v99
    %v107 = vmul.f32 %v103, %v100
    %v108 = vmul.f32 %v103, %v101
    %v109 = vadd.f32 %v104, 0.0
    %v110 = vadd.f32 %v105, 0.0
    %v111 = vadd.f32 %v106, 0.0
    %v112 = vadd.f32 %v107, 0.0
    %v113 = vadd.f32 %v108, 0.0
    %s114 = scalar_lea.vmem %s3, 40
    %v115 = vld [vmem:[%s114] sm:$0xff]
    %v116 = vld [vmem:[%s114 + $0x8] sm:$0xff]
    %v117 = vld [vmem:[%s114 + $0x10] sm:$0xff]
    %v118 = vld [vmem:[%s114 + $0x18] sm:$0xff]
    %v119 = vld [vmem:[%s114 + $0x20] sm:$0xf]
    %s120 = sld [smem:[#allocation2 + $0x1]]
    %s121 = sld [smem:[#allocation5 + $0x1]]
    %s122 = smul.f32 %s120, 1.5
    %v123 = vstv %s121
    %v124 = vmul.f32 %v115, %v123
    %v125 = vmul.f32 %v116, %v123
    %v126 = vmul.f32 %v117, %v123
    %v127 = vmul.f32 %v118, %v123
    %v128 = vmul.f32 %v119, %v123
    %v129 = vadd.f32 %v124, 0.5
    %v130 = vadd.f32 %v125, 0.5
    %v131 = vadd.f32 %v126, 0.5
    %v132 = vadd.f32 %v127, 0.5
    %v133 = vadd.f32 %v128, 0.5
    %v134 = vround.ne.pseudo %v129
    %v135 = vround.ne.pseudo %v130
    %v136 = vround.ne.pseudo %v131
    %v137 = vround.ne.pseudo %v132
    %v138 = vround.ne.pseudo %v133
    %v139 = vsub.f32 %v134, 0.5
    %v140 = vsub.f32 %v135, 0.5
    %v141 = vsub.f32 %v136, 0.5
    %v142 = vsub.f32 %v137, 0.5
    %v143 = vsub.f32 %v138, 0.5
    %v144 = vstv %s120
    %v145 = vmul.f32 %v139, %v144
    %v146 = vmul.f32 %v140, %v144
    %v147 = vmul.f32 %v141, %v144
    %v148 = vmul.f32 %v142, %v144
    %v149 = vmul.f32 %v143, %v144
    %s150 = ssub.f32 0.0, %s122
    %v151 = vstv %s150
    %v152 = vmax.f32 %v151, %v145
    %v153 = vmax.f32 %v151, %v146
    %v154 = vmax.f32 %v151, %v147
    %v155 = vmax.f32 %v151, %v148
    %v156 = vmax.f32 %v151, %v149
    %v157 = vstv %s122
    %v158 = vmin.f32 %v157, %v152
    %v159 = vmin.f32 %v157, %v153
    %v160 = vmin.f32 %v157, %v154
    %v161 = vmin.f32 %v157, %v155
    %v162 = vmin.f32 %v157, %v156
    %s163 = sld [smem:[#allocation7 + $0x1]]
    %v164 = vstv %s163
    %v165 = vmul.f32 %v164, %v158
    %v166 = vmul.f32 %v164, %v159
    %v167 = vmul.f32 %v164, %v160
    %v168 = vmul.f32 %v164, %v161
    %v169 = vmul.f32 %v164, %v162
    %v170 = vadd.f32 %v109, %v165
    %v171 = vadd.f32 %v110, %v166
    %v172 = vadd.f32 %v111, %v167
    %v173 = vadd.f32 %v112, %v168
    %v174 = vadd.f32 %v113, %v169
    %v175 = vpack.c.bf16 %v171, %v170
    %v176 = vpack.c.bf16 %v173, %v172
    %v177 = vpack.c.bf16 %v174, %v174
    %v181 = vunpack.c.l.b16 %v175
    %v182 = vunpack.c.h.b16 %v175
    %v183 = vunpack.c.l.b16 %v176
    %v184 = vunpack.c.h.b16 %v176
    %v185 = vunpack.c.l.b16 %v177
    %v186 = vpack.c.b16 %v181, %v181
    %v187 = vpack.c.b16 %v182, %v182
    %v188 = vpack.c.b16 %v183, %v183
    %v189 = vpack.c.b16 %v184, %v184
    %v190 = vpack.c.b16 %v185, %v185
    %196 = vst [vmem:[#allocation8] sm:$0xf] %v186
    %197 = vst [vmem:[#allocation8 + $0x4] sm:$0xf] %v187
    %198 = vst [vmem:[#allocation8 + $0x8] sm:$0xf] %v188
    %199 = vst [vmem:[#allocation8 + $0xc] sm:$0xf] %v189
    %200 = vst [vmem:[#allocation8 + $0x10] sm:$0x3] %v190
    // Predicated region
    $region30: #{tpu_custom_call.1} parent=1 // pred_check
      _
    $region31: #{tpu_custom_call.1} parent=1 // pred_check_branch
      %202 = sbr.rel (0) target = $region33
    $region32: #{tpu_custom_call.1} parent=1 // pred_region
      %s204 = ssub.s32 320, 320
      %205 = vsyncadd [#allocation3], %s204
      %s206 = sshll.u32 [#allocation8], 4
      %s207 = int_to_ptr.vmem [resolvable:$true] %s206
      %212 = dma.vmem_to_hbm [thread:$0]  %s207, 320, %s4, [#allocation3], 64, 64, 4
    $region33: #{tpu_custom_call.1} parent=1 // pred_fallthru
      _
    // Predicated region
    $region34: #{tpu_custom_call.1} parent=1 // pred_check
      _
    $region35: #{tpu_custom_call.1} parent=1 // pred_check_branch
      %214 = sbr.rel (0) target = $region37
    $region36: #{tpu_custom_call.1} parent=1 // pred_region
      %215 = dma.done [#allocation3], 320
    $region37: #{tpu_custom_call.1} parent=1 // pred_fallthru
      _
    %216 = vsyncpa [#allocation3], 1
    %217 = vsyncpa [#allocation4], 1
    %218 = vsyncpa [#allocation6], 1

</llo_original>
